<compile_context>
chip_gen: v5e
topology: v5e:2x2
jax: 0.10.0
libtpu: 0.0.40
codegen_flags: <defaults>
</compile_context>

<pallas_src>
import jax
import jax.numpy as jnp
import numpy as np
from jax.experimental import pallas as pl
from jax.experimental.pallas import tpu as pltpu

GAMMA, ZETA = -0.1, 1.1      # (gamma, zeta) from the paper / module
N_BITS = 4
N_LEVELS = 2 ** N_BITS


# ----------------------------------------------------------------------------
# Pallas kernel: fully elementwise over the weight slab with per-channel
# (per-row) broadcasting -> one fused VPU/EUP kernel, HBM-bandwidth bound.
# ----------------------------------------------------------------------------
def _adaround_kernel(x_ref, mask_ref, delta_ref, zp_ref, p2_alpha_ref, o_ref):
    delta0 = delta_ref[...]        # (tile_oc, 1)  original per-channel delta
    zp0 = zp_ref[...]              # (tile_oc, 1)  original zero point
    p2a = p2_alpha_ref[...]        # (tile_oc, 1)

    # p2_get_soft_targets(): clamp(sigmoid(p2_alpha)*(zeta-gamma)+gamma, 0, 1)
    p2_soft = jnp.clip(jax.nn.sigmoid(p2a) * (ZETA - GAMMA) + GAMMA, 0.0, 1.0)

    # RAPQ power-of-two scale: delta = 2 ** (floor(log2(delta)) + p2_soft)
    new_delta = jnp.exp2(jnp.floor(jnp.log2(delta0)) + p2_soft)   # (tile_oc,1)
    # NOTE: the masked `delta[mask].data.copy_(...)` snapping lines in the
    # PyTorch forward index with a boolean mask, which returns a *copy* in
    # eager PyTorch, so they never modify `delta` -> faithfully omitted here.
    zero_point = zp0 * delta0 / new_delta                         # (tile_oc,1)

    # Exact per-row reciprocal (O(rows) work instead of a per-element divide).
    inv_delta = 1.0 / new_delta                                   # (tile_oc,1)

    x = x_ref[...]                                                # (tile_oc, tile_k)
    shape = x.shape
    # Hoist/materialize the row-column broadcasts once (JAX does not CSE them).
    inv_b = jnp.broadcast_to(inv_delta, shape)
    nd_b = jnp.broadcast_to(new_delta, shape)
    zp_b = jnp.broadcast_to(zero_point, shape)

    x_floor = jnp.floor(x * inv_b)
    # learned_hard_sigmoid, soft_targets=False: rounding = (alpha >= 0)
    x_int = x_floor + mask_ref[...].astype(x.dtype)
    x_quant = jnp.clip(x_int + zp_b, 0.0, float(N_LEVELS - 1))
    o_ref[...] = (x_quant - zp_b) * nd_b


# ----------------------------------------------------------------------------
# Wrapper: padding to lane-dense 128-multiples, ~2 MiB blocks, 2-D grid.
# ----------------------------------------------------------------------------
def _choose_tiles(oc, k, target_block_bytes=2 << 20):
    """Pick (tile_oc, tile_k, oc_pad, k_pad): lane-dense, ~2 MiB f32 blocks."""
    k128 = pl.cdiv(k, 128) * 128
    tile_k = min(k128, 2048)                      # multiple of 128
    k_pad = pl.cdiv(k128, tile_k) * tile_k

    # rows: multiple of 32 (int8 mask native (32,128) sublane tiling)
    tile_oc = (target_block_bytes // (tile_k * 4)) // 32 * 32
    tile_oc = max(32, min(1024, tile_oc))
    oc32 = pl.cdiv(oc, 32) * 32
    tile_oc = min(tile_oc, oc32)
    # prefer >= 2 row-steps when OC allows it (megacore / v7x dual TC)
    if oc32 // tile_oc < 2 and oc32 >= 64:
        tile_oc = max(32, (oc32 // 2) // 32 * 32)
    oc_pad = pl.cdiv(oc32, tile_oc) * tile_oc
    return tile_oc, tile_k, oc_pad, k_pad


def _pad2(a, rows, cols, fill=0):
    return jnp.pad(a, ((0, rows - a.shape[0]), (0, cols - a.shape[1])),
                   constant_values=fill)


def adaround_forward(x2d, alpha2d, delta2d, zp2d, p2_alpha2d):
    oc, k = x2d.shape
    tile_oc, tile_k, oc_pad, k_pad = _choose_tiles(oc, k)

    # alpha is only consumed as (alpha >= 0): stream a 1-byte mask instead.
    mask2d = (alpha2d >= 0.0).astype(jnp.int8)

    xp = _pad2(x2d.astype(jnp.float32), oc_pad, k_pad)
    mp = _pad2(mask2d, oc_pad, k_pad)
    dp = _pad2(delta2d.astype(jnp.float32), oc_pad, 1, fill=1.0)  # keep log2 finite
    zpp = _pad2(zp2d.astype(jnp.float32), oc_pad, 1)
    p2p = _pad2(p2_alpha2d.astype(jnp.float32), oc_pad, 1)

    grid = (oc_pad // tile_oc, k_pad // tile_k)
    slab_spec = pl.BlockSpec((tile_oc, tile_k), lambda i, j: (i, j))
    col_spec = pl.BlockSpec((tile_oc, 1), lambda i, j: (i, 0))

    out = pl.pallas_call(
        _adaround_kernel,
        # TODO(synk): emit bf16 here if downstream accepts non-bit-exact output
        # (halves the write stream); kept f32 to stay bit-faithful.
        out_shape=jax.ShapeDtypeStruct((oc_pad, k_pad), jnp.float32),
        grid_spec=pltpu.PrefetchScalarGridSpec(
            num_scalar_prefetch=0,
            grid=grid,
            in_specs=[slab_spec, slab_spec, col_spec, col_spec, col_spec],
            out_specs=slab_spec,
        ),
        compiler_params=pltpu.CompilerParams(
            dimension_semantics=("parallel", "parallel"),
            vmem_limit_bytes=48 * 1024 * 1024,   # safe on v5e/v6e/v7x
        ),
    )(xp, mp, dp, zpp, p2p)

    return out[:oc, :k]


# ----------------------------------------------------------------------------
# Parameter setup (deterministic, mirrors UniformAffineQuantizer + init_alpha /
# init_p2_alpha from the module __init__).  Pure-JAX glue.
# ----------------------------------------------------------------------------
def build_params(weight):
    oc = weight.shape[0]
    wf = weight.reshape(oc, -1).astype(jnp.float32)              # (OC, K)

    # UniformAffineQuantizer-style per-channel asymmetric params.
    x_max = jnp.max(wf, axis=1, keepdims=True)
    x_min = jnp.min(wf, axis=1, keepdims=True)
    delta = jnp.maximum((x_max - x_min) / (N_LEVELS - 1), 1e-8)  # (OC, 1)
    zero_point = jnp.round(-x_min / delta)                       # (OC, 1) float

    # init_alpha: rest = x/delta - floor(x/delta); alpha = -log((z-g)/(rest-g)-1)
    rest = wf / delta - jnp.floor(wf / delta)
    alpha = -jnp.log((ZETA - GAMMA) / (rest - GAMMA) - 1.0)      # (OC, K)

    # init_p2_alpha on delta: rest = log2(delta) - floor(log2(delta))
    l2 = jnp.log2(delta)
    p2_rest = l2 - jnp.floor(l2)
    p2_alpha = -jnp.log((ZETA - GAMMA) / (p2_rest - GAMMA) - 1.0)  # (OC, 1)

    return wf, alpha, delta, zero_point, p2_alpha


def reference_forward(x2d, alpha2d, delta2d, zp2d, p2_alpha2d):
    p2_soft = jnp.clip(jax.nn.sigmoid(p2_alpha2d) * (ZETA - GAMMA) + GAMMA, 0.0, 1.0)
    new_delta = jnp.exp2(jnp.floor(jnp.log2(delta2d)) + p2_soft)
    zp = zp2d * delta2d / new_delta
    # Same per-row reciprocal-multiply formulation as the kernel; it matches
    # torch's x / delta to within 1 ulp (only an exact bin-boundary can flip).
    inv = 1.0 / new_delta
    x_int = jnp.floor(x2d * inv) + (alpha2d >= 0.0).astype(jnp.float32)
    x_quant = jnp.clip(x_int + zp, 0.0, float(N_LEVELS - 1))
    return (x_quant - zp) * new_delta


if __name__ == "__main__":
    key = jax.random.PRNGKey(0)
    OC, IC, KH, KW = 16, 4, 3, 3
    weight = jax.random.normal(key, (OC, IC, KH, KW), dtype=jnp.float32) * 0.1

    wf, alpha, delta, zero_point, p2_alpha = build_params(weight)

    out2d = adaround_forward(wf, alpha, delta, zero_point, p2_alpha)
    out2d = jax.block_until_ready(out2d)
    out = out2d.reshape(OC, IC, KH, KW)          # back to PyTorch weight layout

    ref = reference_forward(wf, alpha, delta, zero_point, p2_alpha)
    np.testing.assert_allclose(np.asarray(out2d), np.asarray(ref),
                               rtol=1e-5, atol=1e-5)

    print("KERNEL_OK")
</pallas_src>

<mosaic_0001>
module attributes {stable_mosaic.version = 11 : i64} {
  func.func @_adaround_kernel(%arg0: i32, %arg1: i32, %arg2: memref<32x128xf32, #tpu.memory_space<vmem>>, %arg3: memref<32x128xi8, #tpu.memory_space<vmem>>, %arg4: memref<32x1xf32, #tpu.memory_space<vmem>>, %arg5: memref<32x1xf32, #tpu.memory_space<vmem>>, %arg6: memref<32x1xf32, #tpu.memory_space<vmem>>, %arg7: memref<32x128xf32, #tpu.memory_space<vmem>>) attributes {dimension_semantics = [#tpu.dimension_semantics<parallel>, #tpu.dimension_semantics<parallel>], iteration_bounds = array<i64: 1, 1>, scalar_prefetch = 0 : i64, scratch_operands = 0 : i64, tpu.core_type = #tpu.core_type<tc>, window_params = [{transform_indices = @transform_0, window_bounds = array<i64: 32, 128>}, {transform_indices = @transform_1, window_bounds = array<i64: 32, 128>}, {transform_indices = @transform_2, window_bounds = array<i64: 32, 1>}, {transform_indices = @transform_3, window_bounds = array<i64: 32, 1>}, {transform_indices = @transform_4, window_bounds = array<i64: 32, 1>}, {transform_indices = @transform_5, window_bounds = array<i64: 32, 128>}]} {
    %c0 = arith.constant 0 : index
    %c0_0 = arith.constant 0 : index
    %0 = vector.load %arg4[%c0, %c0_0] : memref<32x1xf32, #tpu.memory_space<vmem>>, vector<32x1xf32>
    %c0_1 = arith.constant 0 : index
    %c0_2 = arith.constant 0 : index
    %1 = vector.load %arg5[%c0_1, %c0_2] : memref<32x1xf32, #tpu.memory_space<vmem>>, vector<32x1xf32>
    %c0_3 = arith.constant 0 : index
    %c0_4 = arith.constant 0 : index
    %2 = vector.load %arg6[%c0_3, %c0_4] : memref<32x1xf32, #tpu.memory_space<vmem>>, vector<32x1xf32>
    %3 = arith.negf %2 : vector<32x1xf32>
    %4 = math.exp %3 : vector<32x1xf32>
    %cst = arith.constant 1.000000e+00 : f32
    %5 = vector.broadcast %cst : f32 to vector<32x1xf32>
    %6 = arith.addf %5, %4 : vector<32x1xf32>
    %7 = arith.divf %5, %6 : vector<32x1xf32>
    %cst_5 = arith.constant 1.200000e+00 : f32
    %8 = vector.broadcast %cst_5 : f32 to vector<32x1xf32>
    %9 = arith.mulf %7, %8 : vector<32x1xf32>
    %cst_6 = arith.constant -1.000000e-01 : f32
    %10 = vector.broadcast %cst_6 : f32 to vector<32x1xf32>
    %11 = arith.addf %9, %10 : vector<32x1xf32>
    %cst_7 = arith.constant 0.000000e+00 : f32
    %cst_8 = arith.constant 1.000000e+00 : f32
    %12 = vector.broadcast %cst_7 : f32 to vector<32x1xf32>
    %13 = arith.maximumf %12, %11 : vector<32x1xf32>
    %14 = vector.broadcast %cst_8 : f32 to vector<32x1xf32>
    %15 = arith.minimumf %14, %13 : vector<32x1xf32>
    %16 = math.log %0 : vector<32x1xf32>
    %cst_9 = arith.constant 2.000000e+00 : f32
    %17 = math.log %cst_9 : f32
    %18 = vector.broadcast %17 : f32 to vector<32x1xf32>
    %19 = arith.divf %16, %18 : vector<32x1xf32>
    %20 = math.floor %19 : vector<32x1xf32>
    %21 = arith.addf %20, %15 : vector<32x1xf32>
    %22 = math.exp2 %21 : vector<32x1xf32>
    %23 = arith.mulf %1, %0 : vector<32x1xf32>
    %24 = arith.divf %23, %22 : vector<32x1xf32>
    %cst_10 = arith.constant 1.000000e+00 : f32
    %25 = vector.broadcast %cst_10 : f32 to vector<32x1xf32>
    %26 = arith.divf %25, %22 : vector<32x1xf32>
    %c0_11 = arith.constant 0 : index
    %c0_12 = arith.constant 0 : index
    %27 = vector.load %arg2[%c0_11, %c0_12] : memref<32x128xf32, #tpu.memory_space<vmem>>, vector<32x128xf32>
    %28 = vector.shape_cast %26 : vector<32x1xf32> to vector<32x1xf32>
    %29 = vector.broadcast %28 : vector<32x1xf32> to vector<32x128xf32>
    %30 = vector.shape_cast %22 : vector<32x1xf32> to vector<32x1xf32>
    %31 = vector.broadcast %30 : vector<32x1xf32> to vector<32x128xf32>
    %32 = vector.shape_cast %24 : vector<32x1xf32> to vector<32x1xf32>
    %33 = vector.broadcast %32 : vector<32x1xf32> to vector<32x128xf32>
    %34 = arith.mulf %27, %29 : vector<32x128xf32>
    %35 = math.floor %34 : vector<32x128xf32>
    %c0_13 = arith.constant 0 : index
    %c0_14 = arith.constant 0 : index
    %36 = vector.load %arg3[%c0_13, %c0_14] : memref<32x128xi8, #tpu.memory_space<vmem>>, vector<32x128xi8>
    %37 = arith.sitofp %36 : vector<32x128xi8> to vector<32x128xf32>
    %38 = arith.addf %35, %37 : vector<32x128xf32>
    %39 = arith.addf %38, %33 : vector<32x128xf32>
    %cst_15 = arith.constant 0.000000e+00 : f32
    %cst_16 = arith.constant 1.500000e+01 : f32
    %40 = vector.broadcast %cst_15 : f32 to vector<32x128xf32>
    %41 = arith.maximumf %40, %39 : vector<32x128xf32>
    %42 = vector.broadcast %cst_16 : f32 to vector<32x128xf32>
    %43 = arith.minimumf %42, %41 : vector<32x128xf32>
    %44 = arith.subf %43, %33 : vector<32x128xf32>
    %45 = arith.mulf %44, %31 : vector<32x128xf32>
    %c0_17 = arith.constant 0 : index
    %c0_18 = arith.constant 0 : index
    %46 = vector.load %arg7[%c0_17, %c0_18] : memref<32x128xf32, #tpu.memory_space<vmem>>, vector<32x128xf32>
    tpu.vector_store %arg7[%c0_17, %c0_18], %45 {strides = array<i32>} : memref<32x128xf32, #tpu.memory_space<vmem>>, vector<32x128xf32>,
    return
  }
  func.func @transform_0(%arg0: i32, %arg1: i32) -> (i32, i32) {
    %c0_i32 = arith.constant 0 : i32
    return %arg0, %arg1 : i32, i32
  }
  func.func @transform_1(%arg0: i32, %arg1: i32) -> (i32, i32) {
    %c0_i32 = arith.constant 0 : i32
    return %arg0, %arg1 : i32, i32
  }
  func.func @transform_2(%arg0: i32, %arg1: i32) -> (i32, i32) {
    %c0_i32 = arith.constant 0 : i32
    %c0_i32_0 = arith.constant 0 : i32
    return %arg0, %c0_i32 : i32, i32
  }
  func.func @transform_3(%arg0: i32, %arg1: i32) -> (i32, i32) {
    %c0_i32 = arith.constant 0 : i32
    %c0_i32_0 = arith.constant 0 : i32
    return %arg0, %c0_i32 : i32, i32
  }
  func.func @transform_4(%arg0: i32, %arg1: i32) -> (i32, i32) {
    %c0_i32 = arith.constant 0 : i32
    %c0_i32_0 = arith.constant 0 : i32
    return %arg0, %c0_i32 : i32, i32
  }
  func.func @transform_5(%arg0: i32, %arg1: i32) -> (i32, i32) {
    %c0_i32 = arith.constant 0 : i32
    return %arg0, %arg1 : i32, i32
  }
}

</mosaic_0001>

<llo_original>
// kernel: tpu_custom_call.1
$region0: #{tpu_custom_call.1}
  #allocation0 [shape = 'u32[]', space=smem, size = 0x4, offset = 0x4, fixed_abs, tag = 'smem constant byte address 0x4 - core index']
  #allocation1 [shape = 'u32[72,128]{1,0:T(1,128)}', space=vmem, size = 0x9000, scoped, tag = 'internal scratch']
  %s0 = inlined_call_operand.vmem [shape: f32[32,128], index: 0, kind: input, shape index: {}]
  %s1 = inlined_call_operand.vmem [shape: s8[32,128], index: 1, kind: input, shape index: {}]
  %s2 = inlined_call_operand.vmem [shape: f32[32,1], index: 2, kind: input, shape index: {}]
  %s3 = inlined_call_operand.vmem [shape: f32[32,1], index: 3, kind: input, shape index: {}]
  %s4 = inlined_call_operand.vmem [shape: f32[32,1], index: 4, kind: input, shape index: {}]
  %s5 = inlined_call_operand.hbm [shape: f32[32,128], index: 5, kind: output, shape index: {}]
  %s6 = sld [smem:[#allocation0]]
  $region30: #{tpu_custom_call.1} parent=0
    _
  %s8 = ssub.s32 1, %s6
  %s9 = scalar_select 0, %s8, %s6
  $region1: #{tpu_custom_call.1} parent=0
    #allocation2 [shape = 'u8[16384]{0}', space=vmem, size = 0x4000, scoped, tag = 'output window, operand 0, single buffered']
    #allocation3 [shape = 's32[1]{0}', space=sflag, size = 0x4, scoped, tag = 'scoped memory for tpu_custom_call.1']
    %10 = vsyncpa [#allocation3], 0
    // Predicated region
    $region2: #{tpu_custom_call.1} parent=1 // pred_check
      _
    $region3: #{tpu_custom_call.1} parent=1 // pred_check_branch
      %12 = sbr.rel (0) target = $region5
    $region4: #{tpu_custom_call.1} parent=1 // pred_region
      _
    $region5: #{tpu_custom_call.1} parent=1 // pred_fallthru
      _
    // Predicated region
    $region6: #{tpu_custom_call.1} parent=1 // pred_check
      _
    $region7: #{tpu_custom_call.1} parent=1 // pred_check_branch
      %14 = sbr.rel (0) target = $region9
    $region8: #{tpu_custom_call.1} parent=1 // pred_region
      _
    $region9: #{tpu_custom_call.1} parent=1 // pred_fallthru
      _
    // Predicated region
    $region10: #{tpu_custom_call.1} parent=1 // pred_check
      _
    $region11: #{tpu_custom_call.1} parent=1 // pred_check_branch
      %16 = sbr.rel (0) target = $region13
    $region12: #{tpu_custom_call.1} parent=1 // pred_region
      _
    $region13: #{tpu_custom_call.1} parent=1 // pred_fallthru
      _
    // Predicated region
    $region14: #{tpu_custom_call.1} parent=1 // pred_check
      _
    $region15: #{tpu_custom_call.1} parent=1 // pred_check_branch
      %18 = sbr.rel (0) target = $region17
    $region16: #{tpu_custom_call.1} parent=1 // pred_region
      _
    $region17: #{tpu_custom_call.1} parent=1 // pred_fallthru
      _
    // Predicated region
    $region18: #{tpu_custom_call.1} parent=1 // pred_check
      _
    $region19: #{tpu_custom_call.1} parent=1 // pred_check_branch
      %20 = sbr.rel (0) target = $region21
    $region20: #{tpu_custom_call.1} parent=1 // pred_region
      _
    $region21: #{tpu_custom_call.1} parent=1 // pred_fallthru
      _
    %v21 = vld [vmem:[%s2] sm:$0xff]
    %v22 = vld [vmem:[%s2 + $0x8] sm:$0xff]
    %v23 = vld [vmem:[%s2 + $0x10] sm:$0xff]
    %v24 = vld [vmem:[%s2 + $0x18] sm:$0xff]
    %v25 = vld [vmem:[%s3] sm:$0xff]
    %v26 = vld [vmem:[%s3 + $0x8] sm:$0xff]
    %v27 = vld [vmem:[%s3 + $0x10] sm:$0xff]
    %v28 = vld [vmem:[%s3 + $0x18] sm:$0xff]
    %v29 = vld [vmem:[%s4] sm:$0xff]
    %v30 = vld [vmem:[%s4 + $0x8] sm:$0xff]
    %v31 = vld [vmem:[%s4 + $0x10] sm:$0xff]
    %v32 = vld [vmem:[%s4 + $0x18] sm:$0xff]
    %v33 = vxor.u32 %v29, 2147483648
    %v34 = vxor.u32 %v30, 2147483648
    %v35 = vxor.u32 %v31, 2147483648
    %v36 = vxor.u32 %v32, 2147483648
    %v37 = vmul.f32 %v33, 1.442695
    %v38 = vpow.pop %v37
    %v39 = vmul.f32 %v34, 1.442695
    %v40 = vpow.pop %v39
    %v41 = vmul.f32 %v35, 1.442695
    %v42 = vpow.pop %v41
    %v43 = vmul.f32 %v36, 1.442695
    %v44 = vpow.pop %v43
    %v45 = vadd.f32 %v38, 1.0
    %v46 = vadd.f32 %v40, 1.0
    %v47 = vadd.f32 %v42, 1.0
    %v48 = vadd.f32 %v44, 1.0
    %v49 = vrcp.pop %v45
    %v50 = vmul.f32 %v45, %v49
    %v51 = vsub.f32 1.0, %v50
    %v52 = vmul.f32 %v49, %v51
    %v53 = vadd.f32 %v49, %v52
    %vm54 = vweird.f32 %v45
    %vm55 = vweird.f32 %v49
    %vm56 = vmor %vm54, %vm55
    %v57 = vsel %vm56, %v49, %v53
    %v58 = vand.u32 2147483647, %v45
    %vm59 = vcmp.eq.f32.partialorder %v58, 8.507059e+37
    %v60 = vand.u32 %v45, 2147483648
    %v61 = vor.u32 1.1754944e-38, %v60
    %v62 = vsel %vm59, %v61, %v57
    %v63 = vmul.f32 1.0, %v62
    %v64 = vrcp.pop %v46
    %v65 = vmul.f32 %v46, %v64
    %v66 = vsub.f32 1.0, %v65
    %v67 = vmul.f32 %v64, %v66
    %v68 = vadd.f32 %v64, %v67
    %vm69 = vweird.f32 %v46
    %vm70 = vweird.f32 %v64
    %vm71 = vmor %vm69, %vm70
    %v72 = vsel %vm71, %v64, %v68
    %v73 = vand.u32 2147483647, %v46
    %vm74 = vcmp.eq.f32.partialorder %v73, 8.507059e+37
    %v75 = vand.u32 %v46, 2147483648
    %v76 = vor.u32 1.1754944e-38, %v75
    %v77 = vsel %vm74, %v76, %v72
    %v78 = vmul.f32 1.0, %v77
    %v79 = vrcp.pop %v47
    %v80 = vmul.f32 %v47, %v79
    %v81 = vsub.f32 1.0, %v80
    %v82 = vmul.f32 %v79, %v81
    %v83 = vadd.f32 %v79, %v82
    %vm84 = vweird.f32 %v47
    %vm85 = vweird.f32 %v79
    %vm86 = vmor %vm84, %vm85
    %v87 = vsel %vm86, %v79, %v83
    %v88 = vand.u32 2147483647, %v47
    %vm89 = vcmp.eq.f32.partialorder %v88, 8.507059e+37
    %v90 = vand.u32 %v47, 2147483648
    %v91 = vor.u32 1.1754944e-38, %v90
    %v92 = vsel %vm89, %v91, %v87
    %v93 = vmul.f32 1.0, %v92
    %v94 = vrcp.pop %v48
    %v95 = vmul.f32 %v48, %v94
    %v96 = vsub.f32 1.0, %v95
    %v97 = vmul.f32 %v94, %v96
    %v98 = vadd.f32 %v94, %v97
    %vm99 = vweird.f32 %v48
    %vm100 = vweird.f32 %v94
    %vm101 = vmor %vm99, %vm100
    %v102 = vsel %vm101, %v94, %v98
    %v103 = vand.u32 2147483647, %v48
    %vm104 = vcmp.eq.f32.partialorder %v103, 8.507059e+37
    %v105 = vand.u32 %v48, 2147483648
    %v106 = vor.u32 1.1754944e-38, %v105
    %v107 = vsel %vm104, %v106, %v102
    %v108 = vmul.f32 1.0, %v107
    %v109 = vmul.f32 %v63, 1.2
    %v110 = vmul.f32 %v78, 1.2
    %v111 = vmul.f32 %v93, 1.2
    %v112 = vmul.f32 %v108, 1.2
    %v113 = vadd.f32 %v109, -0.1
    %v114 = vadd.f32 %v110, -0.1
    %v115 = vadd.f32 %v111, -0.1
    %v116 = vadd.f32 %v112, -0.1
    %v117 = vmax.f32 %v113, 0.0
    %v118 = vmax.f32 %v114, 0.0
    %v119 = vmax.f32 %v115, 0.0
    %v120 = vmax.f32 %v116, 0.0
    %v121 = vmin.f32 %v117, 1.0
    %v122 = vmin.f32 %v118, 1.0
    %v123 = vmin.f32 %v119, 1.0
    %v124 = vmin.f32 %v120, 1.0
    %v125 = vlog2.pop %v21
    %v126 = vmul.f32 %v125, 0.6931472
    %v127 = vlog2.pop %v22
    %v128 = vmul.f32 %v127, 0.6931472
    %v129 = vlog2.pop %v23
    %v130 = vmul.f32 %v129, 0.6931472
    %v131 = vlog2.pop %v24
    %v132 = vmul.f32 %v131, 0.6931472
    %v133 = vrcp.pop 0.6931472
    %v134 = vmul.f32 0.6931472, %v133
    %v135 = vsub.f32 1.0, %v134
    %v136 = vmul.f32 %v133, %v135
    %v137 = vadd.f32 %v133, %v136
    %vm138 = vweird.f32 %v133
    %v139 = vsel %vm138, %v133, %v137
    %v140 = vmul.f32 %v126, %v139
    %v141 = vmul.f32 %v128, %v139
    %v142 = vmul.f32 %v130, %v139
    %v143 = vmul.f32 %v132, %v139
    %v144 = vfloor.f32 %v140
    %v145 = vfloor.f32 %v141
    %v146 = vfloor.f32 %v142
    %v147 = vfloor.f32 %v143
    %v148 = vadd.f32 %v144, %v121
    %v149 = vadd.f32 %v145, %v122
    %v150 = vadd.f32 %v146, %v123
    %v151 = vadd.f32 %v147, %v124
    %v152 = vpow.pop %v148
    %v153 = vpow.pop %v149
    %v154 = vpow.pop %v150
    %v155 = vpow.pop %v151
    %v156 = vmul.f32 %v25, %v21
    %v157 = vmul.f32 %v26, %v22
    %v158 = vmul.f32 %v27, %v23
    %v159 = vmul.f32 %v28, %v24
    %v160 = vrcp.pop %v152
    %v161 = vmul.f32 %v152, %v160
    %v162 = vsub.f32 1.0, %v161
    %v163 = vmul.f32 %v160, %v162
    %v164 = vadd.f32 %v160, %v163
    %vm165 = vweird.f32 %v152
    %vm166 = vweird.f32 %v160
    %vm167 = vmor %vm165, %vm166
    %v168 = vsel %vm167, %v160, %v164
    %v169 = vand.u32 2147483647, %v152
    %vm170 = vcmp.eq.f32.partialorder %v169, 8.507059e+37
    %v171 = vand.u32 %v152, 2147483648
    %v172 = vor.u32 1.1754944e-38, %v171
    %v173 = vsel %vm170, %v172, %v168
    %v174 = vmul.f32 %v156, %v173
    %v175 = vrcp.pop %v153
    %v176 = vmul.f32 %v153, %v175
    %v177 = vsub.f32 1.0, %v176
    %v178 = vmul.f32 %v175, %v177
    %v179 = vadd.f32 %v175, %v178
    %vm180 = vweird.f32 %v153
    %vm181 = vweird.f32 %v175
    %vm182 = vmor %vm180, %vm181
    %v183 = vsel %vm182, %v175, %v179
    %v184 = vand.u32 2147483647, %v153
    %vm185 = vcmp.eq.f32.partialorder %v184, 8.507059e+37
    %v186 = vand.u32 %v153, 2147483648
    %v187 = vor.u32 1.1754944e-38, %v186
    %v188 = vsel %vm185, %v187, %v183
    %v189 = vmul.f32 %v157, %v188
    %v190 = vrcp.pop %v154
    %v191 = vmul.f32 %v154, %v190
    %v192 = vsub.f32 1.0, %v191
    %v193 = vmul.f32 %v190, %v192
    %v194 = vadd.f32 %v190, %v193
    %vm195 = vweird.f32 %v154
    %vm196 = vweird.f32 %v190
    %vm197 = vmor %vm195, %vm196
    %v198 = vsel %vm197, %v190, %v194
    %v199 = vand.u32 2147483647, %v154
    %vm200 = vcmp.eq.f32.partialorder %v199, 8.507059e+37
    %v201 = vand.u32 %v154, 2147483648
    %v202 = vor.u32 1.1754944e-38, %v201
    %v203 = vsel %vm200, %v202, %v198
    %v204 = vmul.f32 %v158, %v203
    %v205 = vrcp.pop %v155
    %v206 = vmul.f32 %v155, %v205
    %v207 = vsub.f32 1.0, %v206
    %v208 = vmul.f32 %v205, %v207
    %v209 = vadd.f32 %v205, %v208
    %vm210 = vweird.f32 %v155
    %vm211 = vweird.f32 %v205
    %vm212 = vmor %vm210, %vm211
    %v213 = vsel %vm212, %v205, %v209
    %v214 = vand.u32 2147483647, %v155
    %vm215 = vcmp.eq.f32.partialorder %v214, 8.507059e+37
    %v216 = vand.u32 %v155, 2147483648
    %v217 = vor.u32 1.1754944e-38, %v216
    %v218 = vsel %vm215, %v217, %v213
    %v219 = vmul.f32 %v159, %v218
    %v220 = vmul.f32 1.0, %v173
    %v221 = vmul.f32 1.0, %v188
    %v222 = vmul.f32 1.0, %v203
    %v223 = vmul.f32 1.0, %v218
    %v224 = vld [vmem:[%s0] sm:$0xff]
    %v225 = vld [vmem:[%s0 + $0x8] sm:$0xff]
    %v226 = vld [vmem:[%s0 + $0x10] sm:$0xff]
    %v227 = vld [vmem:[%s0 + $0x18] sm:$0xff]
    %229 = vset.pattern.permute.xlu0 0
    %230 = vperm.xlu0 %229, %v220
    %v231 = vpop.permute.xlu0 %230
    %234 = vset.pattern.permute.xlu0 0
    %235 = vperm.xlu0 %234, %v221
    %v236 = vpop.permute.xlu0 %235
    %239 = vset.pattern.permute.xlu0 0
    %240 = vperm.xlu0 %239, %v222
    %v241 = vpop.permute.xlu0 %240
    %244 = vset.pattern.permute.xlu0 0
    %245 = vperm.xlu0 %244, %v223
    %v246 = vpop.permute.xlu0 %245
    %249 = vset.pattern.permute.xlu0 0
    %250 = vperm.xlu0 %249, %v152
    %v251 = vpop.permute.xlu0 %250
    %254 = vset.pattern.permute.xlu0 0
    %255 = vperm.xlu0 %254, %v153
    %v256 = vpop.permute.xlu0 %255
    %259 = vset.pattern.permute.xlu0 0
    %260 = vperm.xlu0 %259, %v154
    %v261 = vpop.permute.xlu0 %260
    %264 = vset.pattern.permute.xlu0 0
    %265 = vperm.xlu0 %264, %v155
    %v266 = vpop.permute.xlu0 %265
    %269 = vset.pattern.permute.xlu0 0
    %270 = vperm.xlu0 %269, %v174
    %v271 = vpop.permute.xlu0 %270
    %274 = vset.pattern.permute.xlu0 0
    %275 = vperm.xlu0 %274, %v189
    %v276 = vpop.permute.xlu0 %275
    %279 = vset.pattern.permute.xlu0 0
    %280 = vperm.xlu0 %279, %v204
    %v281 = vpop.permute.xlu0 %280
    %284 = vset.pattern.permute.xlu0 0
    %285 = vperm.xlu0 %284, %v219
    %v286 = vpop.permute.xlu0 %285
    %v288 = vmul.f32 %v224, %v231
    %v289 = vmul.f32 %v225, %v236
    %v290 = vmul.f32 %v226, %v241
    %v291 = vmul.f32 %v227, %v246
    %v292 = vfloor.f32 %v288
    %v293 = vfloor.f32 %v289
    %v294 = vfloor.f32 %v290
    %v295 = vfloor.f32 %v291
    %v296 = vld [vmem:[%s1] sm:$0xff]
    %v297 = vunpack.c.0.s8 %v296
    %v298 = vunpack.c.1.s8 %v296
    %v299 = vunpack.c.2.s8 %v296
    %v300 = vunpack.c.3.s8 %v296
    %v301 = vcvt.s32.f32 %v297
    %v302 = vcvt.s32.f32 %v298
    %v303 = vcvt.s32.f32 %v299
    %v304 = vcvt.s32.f32 %v300
    %v305 = vadd.f32 %v292, %v301
    %v306 = vadd.f32 %v293, %v302
    %v307 = vadd.f32 %v294, %v303
    %v308 = vadd.f32 %v295, %v304
    %v309 = vadd.f32 %v305, %v271
    %v310 = vadd.f32 %v306, %v276
    %v311 = vadd.f32 %v307, %v281
    %v312 = vadd.f32 %v308, %v286
    %v313 = vmax.f32 %v309, 0.0
    %v314 = vmax.f32 %v310, 0.0
    %v315 = vmax.f32 %v311, 0.0
    %v316 = vmax.f32 %v312, 0.0
    %v317 = vmin.f32 %v313, 15.0
    %v318 = vmin.f32 %v314, 15.0
    %v319 = vmin.f32 %v315, 15.0
    %v320 = vmin.f32 %v316, 15.0
    %v321 = vsub.f32 %v317, %v271
    %v322 = vsub.f32 %v318, %v276
    %v323 = vsub.f32 %v319, %v281
    %v324 = vsub.f32 %v320, %v286
    %v325 = vmul.f32 %v321, %v251
    %v326 = vmul.f32 %v322, %v256
    %v327 = vmul.f32 %v323, %v261
    %v328 = vmul.f32 %v324, %v266
    %329 = vst [vmem:[#allocation2] sm:$0xff] %v325
    %330 = vst [vmem:[#allocation2 + $0x8] sm:$0xff] %v326
    %331 = vst [vmem:[#allocation2 + $0x10] sm:$0xff] %v327
    %332 = vst [vmem:[#allocation2 + $0x18] sm:$0xff] %v328
    // Predicated region
    $region22: #{tpu_custom_call.1} parent=1 // pred_check
      _
    $region23: #{tpu_custom_call.1} parent=1 // pred_check_branch
      %334 = sbr.rel (0) target = $region25
    $region24: #{tpu_custom_call.1} parent=1 // pred_region
      %336 = vsyncadd [#allocation3], 0
      %s337 = sshll.u32 [#allocation2], 4
      %s338 = int_to_ptr.vmem [resolvable:$true] %s337
      %s339 = sshll.u32 %s5, 4
      %s340 = int_to_ptr.hbm [resolvable:$true] %s339
      %345 = dma.vmem_to_hbm [thread:$0]  %s338, 512, %s340, [#allocation3], 128, 128, 8
    $region25: #{tpu_custom_call.1} parent=1 // pred_fallthru
      _
    // Predicated region
    $region26: #{tpu_custom_call.1} parent=1 // pred_check
      _
    $region27: #{tpu_custom_call.1} parent=1 // pred_check_branch
      %347 = sbr.rel (0) target = $region29
    $region28: #{tpu_custom_call.1} parent=1 // pred_region
      %349 = dma.done [#allocation3], 512
    $region29: #{tpu_custom_call.1} parent=1 // pred_fallthru
      _
    %350 = vsyncpa [#allocation3], 1

</llo_original>
